<compile_context>
chip_gen: v6e
topology: v6e:2x2x1
jax: 0.10.0
libtpu: 0.0.40
codegen_flags: <defaults>
</compile_context>

<pallas_src>
import jax
import jax.numpy as jnp
from jax import lax
from jax.experimental import pallas as pl
from jax.experimental.pallas import tpu as pltpu


def _df_kernel(x_ref, v1_ref, w_ref, b_ref, o_ref, z_ref):
    """One output-feature tile of out = cat([x, v1], -1) @ W.T + b.

    x_ref : (B, K)      VMEM  flattened state (resident across tiles)
    v1_ref: (B, 1)      VMEM  interpolated exogenous input (resident)
    w_ref : (TN, K+1)   VMEM  untransposed fc1 weight tile (rows = out features)
    b_ref : (1, TN)     VMEM  fc1 bias tile
    o_ref : (B, TN)     VMEM  output tile
    z_ref : (B, K+1)    VMEM  scratch holding the fused concatenation
    """
    K = x_ref.shape[1]
    # Fused torch.cat((x, v1), dim=-1): assemble z in VMEM.  Redone per tile
    # (tiny) so the kernel stays correct under megacore "parallel" sharding.
    z_ref[:, pl.ds(0, K)] = x_ref[...]
    z_ref[:, pl.ds(K, 1)] = v1_ref[...]
    # nn.Linear: contract the last axis of z with the last axis of W
    # (W untransposed), accumulate in f32 on the MXU.
    acc = lax.dot_general(
        z_ref[...], w_ref[...],
        dimension_numbers=(((1,), (1,)), ((), ())),
        preferred_element_type=jnp.float32,
    )
    o_ref[...] = (acc + b_ref[...]).astype(o_ref.dtype)


def _pick_tile_n(n):
    """Lane-dense output-feature tile (multiple of 128 when the shape allows)."""
    for tn in (512, 256, 128):
        if n % tn == 0:
            return tn
    return n


def df_linear_pallas(x_flat, v1, w, b):
    """out[i, n] = sum_k cat([x_flat, v1], -1)[i, k] * w[n, k] + b[n]."""
    B, K = x_flat.shape
    N, Kp1 = w.shape
    assert Kp1 == K + 1, (w.shape, x_flat.shape)
    TN = _pick_tile_n(N)
    grid = (N // TN,)
    b_row = b.reshape(1, N)  # free metadata reshape; keeps the bias lane-dense

    return pl.pallas_call(
        _df_kernel,
        out_shape=jax.ShapeDtypeStruct((B, N), x_flat.dtype),
        grid=grid,
        in_specs=[
            pl.BlockSpec((B, K), lambda j: (0, 0)),      # x: resident across tiles
            pl.BlockSpec((B, 1), lambda j: (0, 0)),      # v1: resident across tiles
            pl.BlockSpec((TN, Kp1), lambda j: (j, 0)),   # W tile, untransposed
            pl.BlockSpec((1, TN), lambda j: (0, j)),     # bias tile
        ],
        out_specs=pl.BlockSpec((B, TN), lambda j: (0, j)),
        scratch_shapes=[pltpu.VMEM((B, Kp1), jnp.float32)],
        compiler_params=pltpu.CompilerParams(
            dimension_semantics=("parallel",),
        ),
    )(x_flat, v1, w, b_row)


# TODO(synk): the real module reads v1_data from a preprocessed dataset selected by
# args.MODE; a deterministic in-script table stands in here, and the (tiny,
# data-dependent) gather + lerp is kept as plain-JAX glue rather than a Pallas op.
def v1_func(t, v1_table):
    L = v1_table.shape[0]
    t1 = jnp.clip(jnp.floor(t), 0, L - 1).astype(jnp.int32)
    delta = t - t1.astype(t.dtype)
    d0 = v1_table[t1]
    d1 = v1_table[t1 + 1]
    return d0 + delta * (d1 - d0)


def df_forward(t, x, w, b, v1_table):
    """JAX/Pallas equivalent of DF.forward(t, x).

    t : (B,)                      times
    x : (B, d, c)                 state
    w : (out_channels, d*c + 1)   fc1.weight (untransposed)
    b : (out_channels,)           fc1.bias
    returns : (B, 1, out_channels)
    """
    B, d, c = x.shape
    K = d * c
    x_flat = x.reshape(B, K)                  # 'b d c -> b (d c)' (row-major == torch)
    v1 = v1_func(t, v1_table).reshape(B, 1)   # v1_func(t).reshape(-1, 1, 1), unit dims dropped
    out = df_linear_pallas(x_flat, v1, w, b)  # (B, N): cat + Linear + bias fused in one kernel
    return out[:, None, :]                    # (B, 1, N) — free metadata reshape


if __name__ == "__main__":
    # Small shapes consistent with the module: x is (b, d, c); fc1 is
    # Linear(d*c + 1, out_channels) with out_channels defaulting to in_channels.
    B, d, c = 8, 4, 32
    in_channels = d * c            # 128
    out_channels = in_channels     # 128 (lane-dense output)
    L = 64                         # synthetic v1 lookup-table length

    key = jax.random.PRNGKey(0)
    kx, kt, kw, kb = jax.random.split(key, 4)

    x = jax.random.normal(kx, (B, d, c), dtype=jnp.float32)
    t = jax.random.uniform(kt, (B,), dtype=jnp.float32,
                           minval=0.0, maxval=float(L - 2))
    v1_table = jnp.sin(0.1 * jnp.arange(L, dtype=jnp.float32))

    # nn.Linear default init: U(-1/sqrt(fan_in), 1/sqrt(fan_in)), fan_in = d*c + 1.
    bound = 1.0 / ((in_channels + 1) ** 0.5)
    w = jax.random.uniform(kw, (out_channels, in_channels + 1), dtype=jnp.float32,
                           minval=-bound, maxval=bound)
    b = jax.random.uniform(kb, (out_channels,), dtype=jnp.float32,
                           minval=-bound, maxval=bound)

    fwd = jax.jit(df_forward)
    out = jax.block_until_ready(fwd(t, x, w, b, v1_table))
    assert out.shape == (B, 1, out_channels), out.shape

    # Pure-JAX reference of the module forward.
    v1_chk = v1_func(t, v1_table).reshape(B, 1, 1)
    z_chk = jnp.concatenate([x.reshape(B, 1, in_channels), v1_chk], axis=2)
    ref = jnp.einsum("bik,nk->bin", z_chk, w,
                     precision=jax.lax.Precision.HIGHEST) + b
    assert jnp.allclose(out, ref, atol=1e-4, rtol=1e-4), \
        float(jnp.max(jnp.abs(out - ref)))

    print("KERNEL_OK")
</pallas_src>

<mosaic_0001>
module attributes {stable_mosaic.version = 11 : i64} {
  func.func @_df_kernel(%arg0: i32, %arg1: memref<8x128xf32, #tpu.memory_space<vmem>>, %arg2: memref<8x1xf32, #tpu.memory_space<vmem>>, %arg3: memref<128x129xf32, #tpu.memory_space<vmem>>, %arg4: memref<1x128xf32, #tpu.memory_space<vmem>>, %arg5: memref<8x128xf32, #tpu.memory_space<vmem>>, %arg6: memref<8x129xf32, #tpu.memory_space<vmem>>) attributes {dimension_semantics = [#tpu.dimension_semantics<parallel>], iteration_bounds = array<i64: 1>, scalar_prefetch = 0 : i64, scratch_operands = 1 : i64, tpu.core_type = #tpu.core_type<tc>, window_params = [{pipeline_mode = #tpu.pipeline_mode<synchronous>, transform_indices = @transform_0, window_bounds = array<i64: 8, 128>}, {pipeline_mode = #tpu.pipeline_mode<synchronous>, transform_indices = @transform_1, window_bounds = array<i64: 8, 1>}, {transform_indices = @transform_2, window_bounds = array<i64: 128, 129>}, {transform_indices = @transform_3, window_bounds = array<i64: 1, 128>}, {transform_indices = @transform_4, window_bounds = array<i64: 8, 128>}]} {
    %c0 = arith.constant 0 : index
    %c0_0 = arith.constant 0 : index
    %0 = vector.load %arg1[%c0, %c0_0] : memref<8x128xf32, #tpu.memory_space<vmem>>, vector<8x128xf32>
    %c0_1 = arith.constant 0 : index
    %c0_2 = arith.constant 0 : index
    %1 = vector.load %arg6[%c0_1, %c0_2] : memref<8x129xf32, #tpu.memory_space<vmem>>, vector<8x128xf32>
    tpu.vector_store %arg6[%c0_1, %c0_2], %0 {strides = array<i32>} : memref<8x129xf32, #tpu.memory_space<vmem>>, vector<8x128xf32>,
    %c0_3 = arith.constant 0 : index
    %c0_4 = arith.constant 0 : index
    %2 = vector.load %arg2[%c0_3, %c0_4] : memref<8x1xf32, #tpu.memory_space<vmem>>, vector<8x1xf32>
    %c0_5 = arith.constant 0 : index
    %c128 = arith.constant 128 : index
    %3 = vector.load %arg6[%c0_5, %c128] : memref<8x129xf32, #tpu.memory_space<vmem>>, vector<8x1xf32>
    tpu.vector_store %arg6[%c0_5, %c128], %2 {strides = array<i32>} : memref<8x129xf32, #tpu.memory_space<vmem>>, vector<8x1xf32>,
    %c0_6 = arith.constant 0 : index
    %c0_7 = arith.constant 0 : index
    %4 = vector.load %arg6[%c0_6, %c0_7] : memref<8x129xf32, #tpu.memory_space<vmem>>, vector<8x129xf32>
    %c0_8 = arith.constant 0 : index
    %c0_9 = arith.constant 0 : index
    %5 = vector.load %arg3[%c0_8, %c0_9] : memref<128x129xf32, #tpu.memory_space<vmem>>, vector<128x129xf32>
    %cst = arith.constant dense<0.000000e+00> : vector<8x128xf32>
    %6 = tpu.matmul %4, %5, %cst {dimension_numbers = #tpu.dot_dimension_numbers<[1], [1], [0], [0], [0, 0, 1, 0], [], []>} : vector<8x129xf32>, vector<128x129xf32>, vector<8x128xf32> -> vector<8x128xf32>
    %c0_10 = arith.constant 0 : index
    %c0_11 = arith.constant 0 : index
    %7 = vector.load %arg4[%c0_10, %c0_11] : memref<1x128xf32, #tpu.memory_space<vmem>>, vector<1x128xf32>
    %8 = vector.broadcast %7 : vector<1x128xf32> to vector<8x128xf32>
    %9 = arith.addf %6, %8 : vector<8x128xf32>
    %c0_12 = arith.constant 0 : index
    %c0_13 = arith.constant 0 : index
    %10 = vector.load %arg5[%c0_12, %c0_13] : memref<8x128xf32, #tpu.memory_space<vmem>>, vector<8x128xf32>
    tpu.vector_store %arg5[%c0_12, %c0_13], %9 {strides = array<i32>} : memref<8x128xf32, #tpu.memory_space<vmem>>, vector<8x128xf32>,
    return
  }
  func.func @transform_0(%arg0: i32) -> (i32, i32) {
    %c0_i32 = arith.constant 0 : i32
    %c0_i32_0 = arith.constant 0 : i32
    %c0_i32_1 = arith.constant 0 : i32
    return %c0_i32, %c0_i32_0 : i32, i32
  }
  func.func @transform_1(%arg0: i32) -> (i32, i32) {
    %c0_i32 = arith.constant 0 : i32
    %c0_i32_0 = arith.constant 0 : i32
    %c0_i32_1 = arith.constant 0 : i32
    return %c0_i32, %c0_i32_0 : i32, i32
  }
  func.func @transform_2(%arg0: i32) -> (i32, i32) {
    %c0_i32 = arith.constant 0 : i32
    %c0_i32_0 = arith.constant 0 : i32
    return %arg0, %c0_i32 : i32, i32
  }
  func.func @transform_3(%arg0: i32) -> (i32, i32) {
    %c0_i32 = arith.constant 0 : i32
    %c0_i32_0 = arith.constant 0 : i32
    return %c0_i32, %arg0 : i32, i32
  }
  func.func @transform_4(%arg0: i32) -> (i32, i32) {
    %c0_i32 = arith.constant 0 : i32
    %c0_i32_0 = arith.constant 0 : i32
    return %c0_i32, %arg0 : i32, i32
  }
}

</mosaic_0001>

<llo_original>
// kernel: df_forward.1
$region0: #{df_forward.1}
  #allocation0 [shape = 'u32[]', space=smem, size = 0x4, offset = 0x4, fixed_abs, tag = 'smem constant byte address 0x4 - core index']
  #allocation1 [shape = 'u32[144,128]{1,0:T(1,128)}', space=vmem, size = 0x12000, scoped, tag = 'internal scratch']
  #allocation2 [shape = 'f32[8,129]{1,0:T(8,128)}', space=vmem, size = 0x2000, scoped, tag = 'scratch operand']
  %s0 = inlined_call_operand.vmem [shape: f32[8,128], index: 0, kind: input, shape index: {}]
  %s1 = inlined_call_operand.vmem [shape: f32[8,1], index: 1, kind: input, shape index: {}]
  %s2 = inlined_call_operand.vmem [shape: f32[128,129], index: 2, kind: input, shape index: {}]
  %s3 = inlined_call_operand.vmem [shape: f32[1,128], index: 3, kind: input, shape index: {}]
  %s4 = inlined_call_operand.hbm [shape: f32[8,128], index: 4, kind: output, shape index: {}]
  %s5 = sld [smem:[#allocation0]]
  $region26: #{df_forward.1} parent=0
    _
  %s7 = ssub.s32 1, %s5
  %s8 = scalar_select 0, %s7, %s5
  $region1: #{df_forward.1} parent=0
    #allocation3 [shape = 'u8[4096]{0}', space=vmem, size = 0x1000, scoped, tag = 'output window, operand 0, single buffered']
    #allocation4 [shape = 's32[1]{0}', space=sflag, size = 0x4, scoped, tag = 'scoped memory for df_forward.1']
    %9 = vsyncpa [#allocation4], 0
    // Predicated region
    $region2: #{df_forward.1} parent=1 // pred_check
      _
    $region3: #{df_forward.1} parent=1 // pred_check_branch
      %11 = sbr.rel (0) target = $region5
    $region4: #{df_forward.1} parent=1 // pred_region
      _
    $region5: #{df_forward.1} parent=1 // pred_fallthru
      _
    // Predicated region
    $region6: #{df_forward.1} parent=1 // pred_check
      _
    $region7: #{df_forward.1} parent=1 // pred_check_branch
      %13 = sbr.rel (0) target = $region9
    $region8: #{df_forward.1} parent=1 // pred_region
      _
    $region9: #{df_forward.1} parent=1 // pred_fallthru
      _
    // Predicated region
    $region10: #{df_forward.1} parent=1 // pred_check
      _
    $region11: #{df_forward.1} parent=1 // pred_check_branch
      %15 = sbr.rel (0) target = $region13
    $region12: #{df_forward.1} parent=1 // pred_region
      _
    $region13: #{df_forward.1} parent=1 // pred_fallthru
      _
    // Predicated region
    $region14: #{df_forward.1} parent=1 // pred_check
      _
    $region15: #{df_forward.1} parent=1 // pred_check_branch
      %17 = sbr.rel (0) target = $region17
    $region16: #{df_forward.1} parent=1 // pred_region
      _
    $region17: #{df_forward.1} parent=1 // pred_fallthru
      _
    %v18 = vld [vmem:[%s0] sm:$0xff]
    %19 = vst [vmem:[#allocation2] sm:$0xff] %v18
    %v20 = vld [vmem:[%s1] sm:$0xff]
    %vm21 = vcmask 7168
    %22 = vst.msk [vmem:[#allocation2 + $0x8] sm:$0xff] %vm21, %v20
    %v23 = vld [vmem:[#allocation2] sm:$0xff]
    %v24 = vld [vmem:[#allocation2 + $0x8] sm:$0xff]
    %v25 = vld [vmem:[%s2] sm:$0xff]
    %v26 = vld [vmem:[%s2 + $0x8] sm:$0xff]
    %v27 = vld [vmem:[%s2 + $0x10] sm:$0xff]
    %v28 = vld [vmem:[%s2 + $0x18] sm:$0xff]
    %v29 = vld [vmem:[%s2 + $0x20] sm:$0xff]
    %v30 = vld [vmem:[%s2 + $0x28] sm:$0xff]
    %v31 = vld [vmem:[%s2 + $0x30] sm:$0xff]
    %v32 = vld [vmem:[%s2 + $0x38] sm:$0xff]
    %v33 = vld [vmem:[%s2 + $0x40] sm:$0xff]
    %v34 = vld [vmem:[%s2 + $0x48] sm:$0xff]
    %v35 = vld [vmem:[%s2 + $0x50] sm:$0xff]
    %v36 = vld [vmem:[%s2 + $0x58] sm:$0xff]
    %v37 = vld [vmem:[%s2 + $0x60] sm:$0xff]
    %v38 = vld [vmem:[%s2 + $0x68] sm:$0xff]
    %v39 = vld [vmem:[%s2 + $0x70] sm:$0xff]
    %v40 = vld [vmem:[%s2 + $0x78] sm:$0xff]
    %v41 = vld [vmem:[%s2 + $0x80] sm:$0xff]
    %v42 = vld [vmem:[%s2 + $0x88] sm:$0xff]
    %v43 = vld [vmem:[%s2 + $0x90] sm:$0xff]
    %v44 = vld [vmem:[%s2 + $0x98] sm:$0xff]
    %v45 = vld [vmem:[%s2 + $0xa0] sm:$0xff]
    %v46 = vld [vmem:[%s2 + $0xa8] sm:$0xff]
    %v47 = vld [vmem:[%s2 + $0xb0] sm:$0xff]
    %v48 = vld [vmem:[%s2 + $0xb8] sm:$0xff]
    %v49 = vld [vmem:[%s2 + $0xc0] sm:$0xff]
    %v50 = vld [vmem:[%s2 + $0xc8] sm:$0xff]
    %v51 = vld [vmem:[%s2 + $0xd0] sm:$0xff]
    %v52 = vld [vmem:[%s2 + $0xd8] sm:$0xff]
    %v53 = vld [vmem:[%s2 + $0xe0] sm:$0xff]
    %v54 = vld [vmem:[%s2 + $0xe8] sm:$0xff]
    %v55 = vld [vmem:[%s2 + $0xf0] sm:$0xff]
    %v56 = vld [vmem:[%s2 + $0xf8] sm:$0xff]
    %v57 = vld [vmem:[%s3] sm:$0x1]
    %v59 = vlaneseq
    %v60 = vshrl.u32 %v59, 7
    %v61 = vsub.s32 0, %v60
    %v62 = vrot.slane %v57, %v61
    %v65 = vsel %vm21, %v24, 0
    %v68 = vsel %vm21, %v26, 0
    %v71 = vsel %vm21, %v28, 0
    %v74 = vsel %vm21, %v30, 0
    %v77 = vsel %vm21, %v32, 0
    %v80 = vsel %vm21, %v34, 0
    %v83 = vsel %vm21, %v36, 0
    %v86 = vsel %vm21, %v38, 0
    %v89 = vsel %vm21, %v40, 0
    %v92 = vsel %vm21, %v42, 0
    %v95 = vsel %vm21, %v44, 0
    %v98 = vsel %vm21, %v46, 0
    %v101 = vsel %vm21, %v48, 0
    %v104 = vsel %vm21, %v50, 0
    %v107 = vsel %vm21, %v52, 0
    %v110 = vsel %vm21, %v54, 0
    %v113 = vsel %vm21, %v56, 0
    %115 = vmatprep.subr.mxu0 %v113
    %116 = vmatpush1.xpose.msra.mxu0 %v55
    %117 = vmatprep.subr.mxu0 %v110
    %118 = vmatpush1.xpose.msra.mxu0 %v53
    %119 = vmatprep.subr.mxu0 %v107
    %120 = vmatpush1.xpose.msra.mxu0 %v51
    %121 = vmatprep.subr.mxu0 %v104
    %122 = vmatpush1.xpose.msra.mxu0 %v49
    %123 = vmatprep.subr.mxu0 %v101
    %124 = vmatpush1.xpose.msra.mxu0 %v47
    %125 = vmatprep.subr.mxu0 %v98
    %126 = vmatpush1.xpose.msra.mxu0 %v45
    %127 = vmatprep.subr.mxu0 %v95
    %128 = vmatpush1.xpose.msra.mxu0 %v43
    %129 = vmatprep.subr.mxu0 %v92
    %130 = vmatpush1.xpose.msra.mxu0 %v41
    %131 = vmatprep.subr.mxu0 %v89
    %132 = vmatpush1.xpose.msra.mxu0 %v39
    %133 = vmatprep.subr.mxu0 %v86
    %134 = vmatpush1.xpose.msra.mxu0 %v37
    %135 = vmatprep.subr.mxu0 %v83
    %136 = vmatpush1.xpose.msra.mxu0 %v35
    %137 = vmatprep.subr.mxu0 %v80
    %138 = vmatpush1.xpose.msra.mxu0 %v33
    %139 = vmatprep.subr.mxu0 %v77
    %140 = vmatpush1.xpose.msra.mxu0 %v31
    %141 = vmatprep.subr.mxu0 %v74
    %142 = vmatpush1.xpose.msra.mxu0 %v29
    %143 = vmatprep.subr.mxu0 %v71
    %144 = vmatpush1.xpose.msra.mxu0 %v27
    %145 = vmatprep.subr.mxu0 %v68
    %146 = vmatpush1.xpose.msra.mxu0 %v25
    %147 = vmatprep.subr.mxu0 0.0
    %148 = vmatpush2.xpose.msra.mxu0 0.0
    %149 = vmatprep.subr.mxu0 0.0
    %150 = vmatpush2.xpose.msra.mxu0 0.0
    %151 = vmatprep.subr.mxu0 0.0
    %152 = vmatpush2.xpose.msra.mxu0 0.0
    %153 = vmatprep.subr.mxu0 0.0
    %154 = vmatpush2.xpose.msra.mxu0 0.0
    %155 = vmatprep.subr.mxu0 0.0
    %156 = vmatpush2.xpose.msra.mxu0 0.0
    %157 = vmatprep.subr.mxu0 0.0
    %158 = vmatpush2.xpose.msra.mxu0 0.0
    %159 = vmatprep.subr.mxu0 0.0
    %160 = vmatpush2.xpose.msra.mxu0 0.0
    %161 = vmatprep.subr.mxu0 0.0
    %162 = vmatpush2.xpose.msra.mxu0 0.0
    %163 = vmatprep.subr.mxu0 0.0
    %164 = vmatpush2.xpose.msra.mxu0 0.0
    %165 = vmatprep.subr.mxu0 0.0
    %166 = vmatpush2.xpose.msra.mxu0 0.0
    %167 = vmatprep.subr.mxu0 0.0
    %168 = vmatpush2.xpose.msra.mxu0 0.0
    %169 = vmatprep.subr.mxu0 0.0
    %170 = vmatpush2.xpose.msra.mxu0 0.0
    %171 = vmatprep.subr.mxu0 0.0
    %172 = vmatpush2.xpose.msra.mxu0 0.0
    %173 = vmatprep.subr.mxu0 0.0
    %174 = vmatpush2.xpose.msra.mxu0 0.0
    %175 = vmatprep.subr.mxu0 0.0
    %176 = vmatpush2.xpose.msra.mxu0 0.0
    %177 = vmatprep.subr.mxu0 0.0
    %178 = vmatpush2.xpose.msra.mxu0 0.0
    %179 = vmatprep.mubr.f32.mxu0 %v65
    %180 = vmatmul.mubr.f32.gmra.mxu0 %v23
    %v181 = vpop.f32.mrf.mxu0
    %v182 = vadd.f32 %v62, %v181
    %v183 = vpop.f32.mrf.mxu0
    %184 = vdwg.mxu0
    %185 = vst [vmem:[#allocation3] sm:$0xff] %v182
    // Predicated region
    $region18: #{df_forward.1} parent=1 // pred_check
      _
    $region19: #{df_forward.1} parent=1 // pred_check_branch
      %187 = sbr.rel (0) target = $region21
    $region20: #{df_forward.1} parent=1 // pred_region
      %s189 = ssub.s32 128, 128
      %190 = vsyncadd [#allocation4], %s189
      %s192 = sshll.u32 [#allocation3], 4
      %s193 = int_to_ptr.vmem [resolvable:$true] %s192
      %195 = dma.vmem_to_hbm [thread:$0]  %s193, 128, %s4, [#allocation4]
    $region21: #{df_forward.1} parent=1 // pred_fallthru
      _
    // Predicated region
    $region22: #{df_forward.1} parent=1 // pred_check
      _
    $region23: #{df_forward.1} parent=1 // pred_check_branch
      %197 = sbr.rel (0) target = $region25
    $region24: #{df_forward.1} parent=1 // pred_region
      %198 = dma.done [#allocation4], 128
    $region25: #{df_forward.1} parent=1 // pred_fallthru
      _
    %199 = vsyncpa [#allocation4], 1

</llo_original>
